<compile_context>
chip_gen: v6e
topology: v6e:2x2x1
jax: 0.10.0
libtpu: 0.0.40
codegen_flags: <defaults>
</compile_context>

<pallas_src>
import jax
import jax.numpy as jnp
from jax.experimental import pallas as pl
from jax.experimental.pallas import tpu as pltpu

THRESH = 5.0
L = 200              # sample_size
BUF_FRONT = 40
BUF_END = 40
L_OUT = L - BUF_FRONT - BUF_END      # 120
LANE = 128
MAX_TB = 512         # batch lanes per grid step (multiple of 128; ~0.4 MiB/tile)


def _round_up(n, m):
    return ((n + m - 1) // m) * m


# ---------------------------------------------------------------------------
# Pallas kernel: one grid step = TB batch elements (batch on lanes).
# ---------------------------------------------------------------------------
def rms_thresh_kernel(xt_ref, out_ref):
    # xt_ref: (L, TB)  -- sample positions on sublanes, batch on lanes.
    x = xt_ref[...].astype(jnp.float32) * (1.0 / 100.0)          # x /= 100
    # TODO(synk): data.BandpassFilter((300, 3000)) is a scipy IIR filtfilt with
    # no clean Pallas equivalent; it is treated as identity here.
    rms = jnp.sqrt(jnp.mean(jnp.square(x), axis=0, keepdims=True))   # (1, TB)
    seg = x[BUF_FRONT:L - BUF_END, :]                                # (L_OUT, TB)
    spike = jnp.abs(seg) >= THRESH * rms
    # (cond * 200 - 100) == where(cond, 100, -100)
    out_ref[...] = jnp.where(spike, 100.0, -100.0).astype(out_ref.dtype)


# ---------------------------------------------------------------------------
# Wrapper
# ---------------------------------------------------------------------------
@jax.jit
def rms_thresh_forward(x):
    """x: (B, C, L) as in the torch module; returns (B, L_OUT)."""
    B = x.shape[0]
    xt = jnp.transpose(x[:, 0, :])                  # (L, B): batch -> lane axis
    tb = min(MAX_TB, _round_up(B, LANE))            # lane-dense batch block
    b_pad = _round_up(B, tb)
    if b_pad != B:
        xt = jnp.pad(xt, ((0, 0), (0, b_pad - B)))  # ragged tail: zero-pad lanes

    out_t = pl.pallas_call(
        rms_thresh_kernel,
        out_shape=jax.ShapeDtypeStruct((L_OUT, b_pad), x.dtype),
        grid=(b_pad // tb,),
        in_specs=[pl.BlockSpec((L, tb), lambda i: (0, i))],
        out_specs=pl.BlockSpec((L_OUT, tb), lambda i: (0, i)),
        compiler_params=pltpu.CompilerParams(
            dimension_semantics=("parallel",)),
    )(xt)
    return out_t.T[:B]                              # (B, L_OUT)


# ---------------------------------------------------------------------------
# Pure-JAX reference (filter treated as identity, same as the kernel)
# ---------------------------------------------------------------------------
def reference_forward(x):
    xs = x[:, 0, :] / 100.0
    rms = jnp.sqrt(jnp.mean(jnp.square(xs), axis=-1, keepdims=True))
    spike = jnp.abs(xs[:, BUF_FRONT:L - BUF_END]) >= THRESH * rms
    return spike.astype(x.dtype) * 200.0 - 100.0


if __name__ == "__main__":
    key = jax.random.PRNGKey(0)
    B = 2
    x = 10.0 * jax.random.normal(key, (B, 1, L), jnp.float32)
    # Inject deterministic large-amplitude "spikes" so both output classes
    # (+100 and -100) are exercised.
    x = x.at[0, 0, 60].set(500.0)
    x = x.at[1, 0, 120].set(-450.0)

    out = rms_thresh_forward(x)
    jax.block_until_ready(out)

    ref = reference_forward(x)
    assert out.shape == (B, L_OUT), out.shape
    assert jnp.allclose(out, ref), float(jnp.max(jnp.abs(out - ref)))
    print("KERNEL_OK")
</pallas_src>

<mosaic_0001>
module attributes {stable_mosaic.version = 11 : i64} {
  func.func @rms_thresh_kernel(%arg0: i32, %arg1: memref<200x128xf32, #tpu.memory_space<vmem>>, %arg2: memref<120x128xf32, #tpu.memory_space<vmem>>) attributes {dimension_semantics = [#tpu.dimension_semantics<parallel>], iteration_bounds = array<i64: 1>, scalar_prefetch = 0 : i64, scratch_operands = 0 : i64, tpu.core_type = #tpu.core_type<tc>, window_params = [{transform_indices = @transform_0, window_bounds = array<i64: 200, 128>}, {transform_indices = @transform_1, window_bounds = array<i64: 120, 128>}]} {
    %c0 = arith.constant 0 : index
    %c0_0 = arith.constant 0 : index
    %0 = vector.load %arg1[%c0, %c0_0] : memref<200x128xf32, #tpu.memory_space<vmem>>, vector<200x128xf32>
    %cst = arith.constant 0.00999999977 : f32
    %1 = vector.broadcast %cst : f32 to vector<200x128xf32>
    %2 = arith.mulf %0, %1 : vector<200x128xf32>
    %3 = arith.mulf %2, %2 : vector<200x128xf32>
    %cst_1 = arith.constant dense<0.000000e+00> : vector<128xf32>
    %4 = vector.multi_reduction <add>, %3, %cst_1 [0] : vector<200x128xf32> to vector<128xf32>
    %5 = vector.shape_cast %4 : vector<128xf32> to vector<1x128xf32>
    %cst_2 = arith.constant 2.000000e+02 : f32
    %6 = vector.broadcast %cst_2 : f32 to vector<1x128xf32>
    %7 = arith.divf %5, %6 : vector<1x128xf32>
    %8 = math.sqrt %7 : vector<1x128xf32>
    %9 = vector.extract_strided_slice %2 {offsets = [40, 0], sizes = [120, 128], strides = [1, 1]} : vector<200x128xf32> to vector<120x128xf32>
    %10 = math.absf %9 : vector<120x128xf32>
    %cst_3 = arith.constant 5.000000e+00 : f32
    %11 = vector.broadcast %cst_3 : f32 to vector<1x128xf32>
    %12 = arith.mulf %11, %8 : vector<1x128xf32>
    %13 = vector.broadcast %12 : vector<1x128xf32> to vector<120x128xf32>
    %14 = arith.cmpf oge, %10, %13 : vector<120x128xf32>
    %cst_4 = arith.constant 1.000000e+02 : f32
    %cst_5 = arith.constant -1.000000e+02 : f32
    %15 = vector.broadcast %cst_4 : f32 to vector<120x128xf32>
    %16 = vector.broadcast %cst_5 : f32 to vector<120x128xf32>
    %17 = arith.select %14, %15, %16 : vector<120x128xi1>, vector<120x128xf32>
    %c0_6 = arith.constant 0 : index
    %c0_7 = arith.constant 0 : index
    %18 = vector.load %arg2[%c0_6, %c0_7] : memref<120x128xf32, #tpu.memory_space<vmem>>, vector<120x128xf32>
    tpu.vector_store %arg2[%c0_6, %c0_7], %17 {strides = array<i32>} : memref<120x128xf32, #tpu.memory_space<vmem>>, vector<120x128xf32>,
    return
  }
  func.func @transform_0(%arg0: i32) -> (i32, i32) {
    %c0_i32 = arith.constant 0 : i32
    %c0_i32_0 = arith.constant 0 : i32
    return %c0_i32, %arg0 : i32, i32
  }
  func.func @transform_1(%arg0: i32) -> (i32, i32) {
    %c0_i32 = arith.constant 0 : i32
    %c0_i32_0 = arith.constant 0 : i32
    return %c0_i32, %arg0 : i32, i32
  }
}

</mosaic_0001>

<llo_original>
// kernel: rms_thresh_forward.1
$region0: #{rms_thresh_forward.1}
  #allocation0 [shape = 'u32[]', space=smem, size = 0x4, offset = 0x4, fixed_abs, tag = 'smem constant byte address 0x4 - core index']
  #allocation1 [shape = 'u32[144,128]{1,0:T(1,128)}', space=vmem, size = 0x12000, scoped, tag = 'internal scratch']
  %s0 = inlined_call_operand.vmem [shape: f32[200,128], index: 0, kind: input, shape index: {}]
  %s1 = inlined_call_operand.vmem [shape: f32[120,128], index: 1, kind: output, shape index: {}]
  %s2 = sld [smem:[#allocation0]]
  $region14: #{rms_thresh_forward.1} parent=0
    _
  %s4 = ssub.s32 1, %s2
  %s5 = scalar_select 0, %s4, %s2
  // Predicated region
  $region2: #{rms_thresh_forward.1} parent=0 // pred_check
    _
  $region3: #{rms_thresh_forward.1} parent=0 // pred_check_branch
    %7 = sbr.rel (0) target = $region5
  $region4: #{rms_thresh_forward.1} parent=0 // pred_region
    _
  $region5: #{rms_thresh_forward.1} parent=0 // pred_fallthru
    _
  %v8 = vld [vmem:[%s0] sm:$0xff]
  %v9 = vld [vmem:[%s0 + $0x8] sm:$0xff]
  %v10 = vld [vmem:[%s0 + $0x10] sm:$0xff]
  %v11 = vld [vmem:[%s0 + $0x18] sm:$0xff]
  %v12 = vld [vmem:[%s0 + $0x20] sm:$0xff]
  %v13 = vld [vmem:[%s0 + $0x28] sm:$0xff]
  %v14 = vld [vmem:[%s0 + $0x30] sm:$0xff]
  %v15 = vld [vmem:[%s0 + $0x38] sm:$0xff]
  %v16 = vld [vmem:[%s0 + $0x40] sm:$0xff]
  %v17 = vld [vmem:[%s0 + $0x48] sm:$0xff]
  %v18 = vld [vmem:[%s0 + $0x50] sm:$0xff]
  %v19 = vld [vmem:[%s0 + $0x58] sm:$0xff]
  %v20 = vld [vmem:[%s0 + $0x60] sm:$0xff]
  %v21 = vld [vmem:[%s0 + $0x68] sm:$0xff]
  %v22 = vld [vmem:[%s0 + $0x70] sm:$0xff]
  %v23 = vld [vmem:[%s0 + $0x78] sm:$0xff]
  %v24 = vld [vmem:[%s0 + $0x80] sm:$0xff]
  %v25 = vld [vmem:[%s0 + $0x88] sm:$0xff]
  %v26 = vld [vmem:[%s0 + $0x90] sm:$0xff]
  %v27 = vld [vmem:[%s0 + $0x98] sm:$0xff]
  %v28 = vld [vmem:[%s0 + $0xa0] sm:$0xff]
  %v29 = vld [vmem:[%s0 + $0xa8] sm:$0xff]
  %v30 = vld [vmem:[%s0 + $0xb0] sm:$0xff]
  %v31 = vld [vmem:[%s0 + $0xb8] sm:$0xff]
  %v32 = vld [vmem:[%s0 + $0xc0] sm:$0xff]
  %v33 = vmul.f32 %v8, 0.01
  %v34 = vmul.f32 %v9, 0.01
  %v35 = vmul.f32 %v10, 0.01
  %v36 = vmul.f32 %v11, 0.01
  %v37 = vmul.f32 %v12, 0.01
  %v38 = vmul.f32 %v13, 0.01
  %v39 = vmul.f32 %v14, 0.01
  %v40 = vmul.f32 %v15, 0.01
  %v41 = vmul.f32 %v16, 0.01
  %v42 = vmul.f32 %v17, 0.01
  %v43 = vmul.f32 %v18, 0.01
  %v44 = vmul.f32 %v19, 0.01
  %v45 = vmul.f32 %v20, 0.01
  %v46 = vmul.f32 %v21, 0.01
  %v47 = vmul.f32 %v22, 0.01
  %v48 = vmul.f32 %v23, 0.01
  %v49 = vmul.f32 %v24, 0.01
  %v50 = vmul.f32 %v25, 0.01
  %v51 = vmul.f32 %v26, 0.01
  %v52 = vmul.f32 %v27, 0.01
  %v53 = vmul.f32 %v28, 0.01
  %v54 = vmul.f32 %v29, 0.01
  %v55 = vmul.f32 %v30, 0.01
  %v56 = vmul.f32 %v31, 0.01
  %v57 = vmul.f32 %v32, 0.01
  %v58 = vmul.f32 %v33, %v33
  %v59 = vmul.f32 %v34, %v34
  %v60 = vmul.f32 %v35, %v35
  %v61 = vmul.f32 %v36, %v36
  %v62 = vmul.f32 %v37, %v37
  %v63 = vmul.f32 %v38, %v38
  %v64 = vmul.f32 %v39, %v39
  %v65 = vmul.f32 %v40, %v40
  %v66 = vmul.f32 %v41, %v41
  %v67 = vmul.f32 %v42, %v42
  %v68 = vmul.f32 %v43, %v43
  %v69 = vmul.f32 %v44, %v44
  %v70 = vmul.f32 %v45, %v45
  %v71 = vmul.f32 %v46, %v46
  %v72 = vmul.f32 %v47, %v47
  %v73 = vmul.f32 %v48, %v48
  %v74 = vmul.f32 %v49, %v49
  %v75 = vmul.f32 %v50, %v50
  %v76 = vmul.f32 %v51, %v51
  %v77 = vmul.f32 %v52, %v52
  %v78 = vmul.f32 %v53, %v53
  %v79 = vmul.f32 %v54, %v54
  %v80 = vmul.f32 %v55, %v55
  %v81 = vmul.f32 %v56, %v56
  %v82 = vmul.f32 %v57, %v57
  %v83 = vadd.f32 %v58, %v59
  %v84 = vadd.f32 %v83, %v60
  %v85 = vadd.f32 %v84, %v61
  %v86 = vadd.f32 %v85, %v62
  %v87 = vadd.f32 %v86, %v63
  %v88 = vadd.f32 %v87, %v64
  %v89 = vadd.f32 %v88, %v65
  %v90 = vadd.f32 %v89, %v66
  %v91 = vadd.f32 %v90, %v67
  %v92 = vadd.f32 %v91, %v68
  %v93 = vadd.f32 %v92, %v69
  %v94 = vadd.f32 %v93, %v70
  %v95 = vadd.f32 %v94, %v71
  %v96 = vadd.f32 %v95, %v72
  %v97 = vadd.f32 %v96, %v73
  %v98 = vadd.f32 %v97, %v74
  %v99 = vadd.f32 %v98, %v75
  %v100 = vadd.f32 %v99, %v76
  %v101 = vadd.f32 %v100, %v77
  %v102 = vadd.f32 %v101, %v78
  %v103 = vadd.f32 %v102, %v79
  %v104 = vadd.f32 %v103, %v80
  %v105 = vadd.f32 %v104, %v81
  %v106 = vadd.f32 %v105, %v82
  %v107 = vrot.slane %v106, 4
  %v108 = vadd.f32 %v106, %v107
  %v109 = vrot.slane %v108, 2
  %v110 = vadd.f32 %v108, %v109
  %v111 = vrot.slane %v110, 1
  %v112 = vadd.f32 %v110, %v111
  %v113 = vrcp.pop 200.0
  %v114 = vmul.f32 %v112, %v113
  %v115 = vrsqrt.pop %v114
  %v116 = vmul.f32 %v114, %v115
  %vm117 = vcmp.eq.f32.partialorder %v114, inf
  %v118 = vsel %vm117, %v114, %v116
  %vm119 = vcmp.eq.f32.partialorder %v114, 0.0
  %v120 = vand.u32 %v114, 2147483648
  %v121 = vsel %vm119, %v120, %v118
  %v122 = vand.u32 2147483647, %v38
  %v123 = vand.u32 2147483647, %v39
  %v124 = vand.u32 2147483647, %v40
  %v125 = vand.u32 2147483647, %v41
  %v126 = vand.u32 2147483647, %v42
  %v127 = vand.u32 2147483647, %v43
  %v128 = vand.u32 2147483647, %v44
  %v129 = vand.u32 2147483647, %v45
  %v130 = vand.u32 2147483647, %v46
  %v131 = vand.u32 2147483647, %v47
  %v132 = vand.u32 2147483647, %v48
  %v133 = vand.u32 2147483647, %v49
  %v134 = vand.u32 2147483647, %v50
  %v135 = vand.u32 2147483647, %v51
  %v136 = vand.u32 2147483647, %v52
  %v137 = vmul.f32 %v121, 5.0
  %vm138 = vcmp.ge.f32.partialorder %v122, %v137
  %vm139 = vcmp.ge.f32.partialorder %v123, %v137
  %vm140 = vcmp.ge.f32.partialorder %v124, %v137
  %vm141 = vcmp.ge.f32.partialorder %v125, %v137
  %vm142 = vcmp.ge.f32.partialorder %v126, %v137
  %vm143 = vcmp.ge.f32.partialorder %v127, %v137
  %vm144 = vcmp.ge.f32.partialorder %v128, %v137
  %vm145 = vcmp.ge.f32.partialorder %v129, %v137
  %vm146 = vcmp.ge.f32.partialorder %v130, %v137
  %vm147 = vcmp.ge.f32.partialorder %v131, %v137
  %vm148 = vcmp.ge.f32.partialorder %v132, %v137
  %vm149 = vcmp.ge.f32.partialorder %v133, %v137
  %vm150 = vcmp.ge.f32.partialorder %v134, %v137
  %vm151 = vcmp.ge.f32.partialorder %v135, %v137
  %vm152 = vcmp.ge.f32.partialorder %v136, %v137
  %v153 = vsel %vm138, 100.0, -100.0
  %v154 = vsel %vm139, 100.0, -100.0
  %v155 = vsel %vm140, 100.0, -100.0
  %v156 = vsel %vm141, 100.0, -100.0
  %v157 = vsel %vm142, 100.0, -100.0
  %v158 = vsel %vm143, 100.0, -100.0
  %v159 = vsel %vm144, 100.0, -100.0
  %v160 = vsel %vm145, 100.0, -100.0
  %v161 = vsel %vm146, 100.0, -100.0
  %v162 = vsel %vm147, 100.0, -100.0
  %v163 = vsel %vm148, 100.0, -100.0
  %v164 = vsel %vm149, 100.0, -100.0
  %v165 = vsel %vm150, 100.0, -100.0
  %v166 = vsel %vm151, 100.0, -100.0
  %v167 = vsel %vm152, 100.0, -100.0
  %168 = vst [vmem:[%s1] sm:$0xff] %v153
  %169 = vst [vmem:[%s1 + $0x8] sm:$0xff] %v154
  %170 = vst [vmem:[%s1 + $0x10] sm:$0xff] %v155
  %171 = vst [vmem:[%s1 + $0x18] sm:$0xff] %v156
  %172 = vst [vmem:[%s1 + $0x20] sm:$0xff] %v157
  %173 = vst [vmem:[%s1 + $0x28] sm:$0xff] %v158
  %174 = vst [vmem:[%s1 + $0x30] sm:$0xff] %v159
  %175 = vst [vmem:[%s1 + $0x38] sm:$0xff] %v160
  %176 = vst [vmem:[%s1 + $0x40] sm:$0xff] %v161
  %177 = vst [vmem:[%s1 + $0x48] sm:$0xff] %v162
  %178 = vst [vmem:[%s1 + $0x50] sm:$0xff] %v163
  %179 = vst [vmem:[%s1 + $0x58] sm:$0xff] %v164
  %180 = vst [vmem:[%s1 + $0x60] sm:$0xff] %v165
  %181 = vst [vmem:[%s1 + $0x68] sm:$0xff] %v166
  %182 = vst [vmem:[%s1 + $0x70] sm:$0xff] %v167
  // Predicated region
  $region6: #{rms_thresh_forward.1} parent=0 // pred_check
    _
  $region7: #{rms_thresh_forward.1} parent=0 // pred_check_branch
    %184 = sbr.rel (0) target = $region9
  $region8: #{rms_thresh_forward.1} parent=0 // pred_region
    _
  $region9: #{rms_thresh_forward.1} parent=0 // pred_fallthru
    _
  // Predicated region
  $region10: #{rms_thresh_forward.1} parent=0 // pred_check
    _
  $region11: #{rms_thresh_forward.1} parent=0 // pred_check_branch
    %186 = sbr.rel (0) target = $region13
  $region12: #{rms_thresh_forward.1} parent=0 // pred_region
    _
  $region13: #{rms_thresh_forward.1} parent=0 // pred_fallthru
    _

</llo_original>
